<compile_context>
chip_gen: v5e
topology: v5e:2x2
jax: 0.10.0
libtpu: 0.0.40
codegen_flags: <defaults>
</compile_context>

<pallas_src>
import jax
import jax.numpy as jnp
from jax.experimental import pallas as pl
from jax.experimental.pallas import tpu as pltpu


def _connect_kernel(x_ref, att_ref, w1_ref, w2_ref, b_ref, o_ref):
    # x_ref / att_ref / o_ref: (Bt, C, St)  -- St sits in the lane dimension.
    w1 = w1_ref[...]              # (C_out, C_in)  acts on x
    w2 = w2_ref[...]              # (C_out, C_in)  acts on x * sigmoid(att)
    b = b_ref[...]                # (C_out, 1)     BN-folded bias

    bt = x_ref.shape[0]
    for bi in range(bt):          # static unroll; bt is small by construction
        x2d = x_ref[bi]           # (C, St), already f32 -> no astype pass
        g = x2d * jax.nn.sigmoid(att_ref[bi])
        z = (jnp.dot(w1, x2d, preferred_element_type=jnp.float32)
             + jnp.dot(w2, g, preferred_element_type=jnp.float32)
             + b)                 # (C, St)
        # Mish: z * tanh(softplus(z)), numerically stable softplus.
        sp = jnp.maximum(z, 0.0) + jnp.log(1.0 + jnp.exp(-jnp.abs(z)))
        o_ref[bi] = (z * jnp.tanh(sp)).astype(o_ref.dtype)


def connect_pallas(x, att, conv_w, bn_gamma, bn_beta, bn_mean, bn_var, eps=1e-5):
    """x, att: (B, C, H, W) f32.  conv_w: (C, 2C, 1, 1) (Conv2d 1x1, bias=False)."""
    B, C, H, W = x.shape
    S = H * W

    # NCHW -> (B, C, S): pure reshape, no HBM transpose.
    x3 = x.reshape(B, C, S)
    att3 = att.reshape(B, C, S)

    # Fold inference BatchNorm into the 1x1 conv weight / bias.
    scale = bn_gamma / jnp.sqrt(bn_var + eps)            # (C,)
    w2d = conv_w.reshape(C, 2 * C) * scale[:, None]      # (C_out, 2C_in)
    bias = (bn_beta - scale * bn_mean).reshape(C, 1)     # (C_out, 1)
    w1 = w2d[:, :C]                                      # applies to x
    w2 = w2d[:, C:]                                      # applies to x*sigmoid(att)

    # Spatial tile: full S unless large and cleanly 128-divisible.
    st = S
    if C * S * 4 > 2 * 1024 * 1024 and S % 128 == 0:
        st = 128
        while (st * 2 <= S and S % (st * 2) == 0
               and C * (st * 2) * 4 <= 2 * 1024 * 1024):
            st *= 2
    # TODO(synk): very large S that is not a multiple of 128 falls back to one
    # monolithic S block (padding/BoundedSlice would be needed to tile it).

    # Batch tile: fold batch elements so each grid step moves a decent chunk
    # (~0.35 us fixed overhead per step), while keeping the double-buffered
    # footprint small enough for v7x's 64 MiB VMEM.
    per_elem = 3 * C * st * 4            # x + att + out bytes per batch element
    bt = 1
    for d in range(1, B + 1):
        if B % d == 0 and d * per_elem <= 4 * 1024 * 1024:
            bt = d
    nb, ns = B // bt, S // st

    out = pl.pallas_call(
        _connect_kernel,
        out_shape=jax.ShapeDtypeStruct((B, C, S), x.dtype),
        grid_spec=pltpu.PrefetchScalarGridSpec(
            num_scalar_prefetch=0,
            grid=(nb, ns),
            in_specs=[
                pl.BlockSpec((bt, C, st), lambda i, j: (i, 0, j)),
                pl.BlockSpec((bt, C, st), lambda i, j: (i, 0, j)),
                pl.BlockSpec((C, C), lambda i, j: (0, 0)),
                pl.BlockSpec((C, C), lambda i, j: (0, 0)),
                pl.BlockSpec((C, 1), lambda i, j: (0, 0)),
            ],
            out_specs=pl.BlockSpec((bt, C, st), lambda i, j: (i, 0, j)),
        ),
        compiler_params=pltpu.CompilerParams(
            dimension_semantics=("parallel", "parallel"),
            vmem_limit_bytes=32 * 1024 * 1024),
    )(x3, att3, w1, w2, bias)

    # (B, C, S) -> NCHW: pure reshape.
    return out.reshape(B, C, H, W)


def connect_reference(x, att, conv_w, bn_gamma, bn_beta, bn_mean, bn_var, eps=1e-5):
    """Pure-JAX reference reproducing the PyTorch forward (eval-mode BN)."""
    B, C, H, W = x.shape
    g = x * jax.nn.sigmoid(att)
    cat = jnp.concatenate([x, g], axis=1)                    # (B, 2C, H, W)
    w2d = conv_w.reshape(C, 2 * C)
    z = jnp.einsum('oc,bchw->bohw', w2d, cat)                # 1x1 conv, bias=False
    inv = 1.0 / jnp.sqrt(bn_var + eps)
    z = ((z - bn_mean[None, :, None, None]) * (bn_gamma * inv)[None, :, None, None]
         + bn_beta[None, :, None, None])
    return z * jnp.tanh(jax.nn.softplus(z))                  # Mish


if __name__ == "__main__":
    key = jax.random.PRNGKey(0)
    B, C, H, W = 2, 4, 16, 16

    ks = jax.random.split(key, 7)
    x = jax.random.normal(ks[0], (B, C, H, W), dtype=jnp.float32)
    att = jax.random.normal(ks[1], (B, C, H, W), dtype=jnp.float32)

    # Conv2d(2C, C, 1, bias=False) weight + BatchNorm2d(C) params (inference).
    conv_w = jax.random.normal(ks[2], (C, 2 * C, 1, 1), dtype=jnp.float32) * 0.1
    bn_gamma = 1.0 + jax.random.normal(ks[3], (C,), dtype=jnp.float32) * 0.1
    bn_beta = jax.random.normal(ks[4], (C,), dtype=jnp.float32) * 0.1
    bn_mean = jax.random.normal(ks[5], (C,), dtype=jnp.float32) * 0.1
    bn_var = jax.random.uniform(ks[6], (C,), dtype=jnp.float32,
                                minval=0.5, maxval=1.5)

    out = connect_pallas(x, att, conv_w, bn_gamma, bn_beta, bn_mean, bn_var)
    out = jax.block_until_ready(out)

    ref = connect_reference(x, att, conv_w, bn_gamma, bn_beta, bn_mean, bn_var)
    assert out.shape == (B, C, H, W)
    assert jnp.allclose(out, ref, rtol=1e-4, atol=1e-4), "mismatch vs reference"

    print("KERNEL_OK")
</pallas_src>

<mosaic_0001>
module attributes {stable_mosaic.version = 11 : i64} {
  func.func @_connect_kernel(%arg0: i32, %arg1: i32, %arg2: memref<2x4x256xf32, #tpu.memory_space<vmem>>, %arg3: memref<2x4x256xf32, #tpu.memory_space<vmem>>, %arg4: memref<4x4xf32, #tpu.memory_space<vmem>>, %arg5: memref<4x4xf32, #tpu.memory_space<vmem>>, %arg6: memref<4x1xf32, #tpu.memory_space<vmem>>, %arg7: memref<2x4x256xf32, #tpu.memory_space<vmem>>) attributes {dimension_semantics = [#tpu.dimension_semantics<parallel>, #tpu.dimension_semantics<parallel>], iteration_bounds = array<i64: 1, 1>, scalar_prefetch = 0 : i64, scratch_operands = 0 : i64, tpu.core_type = #tpu.core_type<tc>, window_params = [{transform_indices = @transform_0, window_bounds = array<i64: 2, 4, 256>}, {transform_indices = @transform_1, window_bounds = array<i64: 2, 4, 256>}, {pipeline_mode = #tpu.pipeline_mode<synchronous>, transform_indices = @transform_2, window_bounds = array<i64: 4, 4>}, {pipeline_mode = #tpu.pipeline_mode<synchronous>, transform_indices = @transform_3, window_bounds = array<i64: 4, 4>}, {pipeline_mode = #tpu.pipeline_mode<synchronous>, transform_indices = @transform_4, window_bounds = array<i64: 4, 1>}, {transform_indices = @transform_5, window_bounds = array<i64: 2, 4, 256>}]} {
    %c0 = arith.constant 0 : index
    %c0_0 = arith.constant 0 : index
    %0 = vector.load %arg4[%c0, %c0_0] : memref<4x4xf32, #tpu.memory_space<vmem>>, vector<4x4xf32>
    %c0_1 = arith.constant 0 : index
    %c0_2 = arith.constant 0 : index
    %1 = vector.load %arg5[%c0_1, %c0_2] : memref<4x4xf32, #tpu.memory_space<vmem>>, vector<4x4xf32>
    %c0_3 = arith.constant 0 : index
    %c0_4 = arith.constant 0 : index
    %2 = vector.load %arg6[%c0_3, %c0_4] : memref<4x1xf32, #tpu.memory_space<vmem>>, vector<4x1xf32>
    %c0_5 = arith.constant 0 : index
    %c0_6 = arith.constant 0 : index
    %c0_7 = arith.constant 0 : index
    %3 = vector.load %arg2[%c0_5, %c0_6, %c0_7] : memref<2x4x256xf32, #tpu.memory_space<vmem>>, vector<1x4x256xf32>
    %4 = vector.shape_cast %3 : vector<1x4x256xf32> to vector<4x256xf32>
    %c0_8 = arith.constant 0 : index
    %c0_9 = arith.constant 0 : index
    %c0_10 = arith.constant 0 : index
    %5 = vector.load %arg3[%c0_8, %c0_9, %c0_10] : memref<2x4x256xf32, #tpu.memory_space<vmem>>, vector<1x4x256xf32>
    %6 = vector.shape_cast %5 : vector<1x4x256xf32> to vector<4x256xf32>
    %7 = arith.negf %6 : vector<4x256xf32>
    %8 = math.exp %7 : vector<4x256xf32>
    %cst = arith.constant 1.000000e+00 : f32
    %9 = vector.broadcast %cst : f32 to vector<4x256xf32>
    %10 = arith.addf %9, %8 : vector<4x256xf32>
    %11 = arith.divf %9, %10 : vector<4x256xf32>
    %12 = arith.mulf %4, %11 : vector<4x256xf32>
    %cst_11 = arith.constant dense<0.000000e+00> : vector<4x256xf32>
    %13 = tpu.matmul %0, %4, %cst_11 {dimension_numbers = #tpu.dot_dimension_numbers<[1], [0], [0], [1], [0, 0, 1, 1], [], []>} : vector<4x4xf32>, vector<4x256xf32>, vector<4x256xf32> -> vector<4x256xf32>
    %cst_12 = arith.constant dense<0.000000e+00> : vector<4x256xf32>
    %14 = tpu.matmul %1, %12, %cst_12 {dimension_numbers = #tpu.dot_dimension_numbers<[1], [0], [0], [1], [0, 0, 1, 1], [], []>} : vector<4x4xf32>, vector<4x256xf32>, vector<4x256xf32> -> vector<4x256xf32>
    %15 = arith.addf %13, %14 : vector<4x256xf32>
    %16 = vector.broadcast %2 : vector<4x1xf32> to vector<4x256xf32>
    %17 = arith.addf %15, %16 : vector<4x256xf32>
    %cst_13 = arith.constant 0.000000e+00 : f32
    %18 = vector.broadcast %cst_13 : f32 to vector<4x256xf32>
    %19 = arith.maximumf %17, %18 : vector<4x256xf32>
    %20 = math.absf %17 : vector<4x256xf32>
    %cst_14 = arith.constant 0.000000e+00 : f32
    %21 = vector.broadcast %cst_14 : f32 to vector<4x256xf32>
    %22 = arith.subf %21, %20 : vector<4x256xf32>
    %23 = math.exp %22 : vector<4x256xf32>
    %cst_15 = arith.constant 1.000000e+00 : f32
    %24 = vector.broadcast %cst_15 : f32 to vector<4x256xf32>
    %25 = arith.addf %24, %23 : vector<4x256xf32>
    %26 = math.log %25 : vector<4x256xf32>
    %27 = arith.addf %19, %26 : vector<4x256xf32>
    %28 = math.tanh %27 : vector<4x256xf32>
    %29 = arith.mulf %17, %28 : vector<4x256xf32>
    %c0_16 = arith.constant 0 : index
    %c0_17 = arith.constant 0 : index
    %c0_18 = arith.constant 0 : index
    %30 = vector.load %arg7[%c0_16, %c0_17, %c0_18] : memref<2x4x256xf32, #tpu.memory_space<vmem>>, vector<1x4x256xf32>
    %31 = vector.shape_cast %30 : vector<1x4x256xf32> to vector<4x256xf32>
    %32 = vector.shape_cast %29 : vector<4x256xf32> to vector<1x4x256xf32>
    tpu.vector_store %arg7[%c0_16, %c0_17, %c0_18], %32 {strides = array<i32>} : memref<2x4x256xf32, #tpu.memory_space<vmem>>, vector<1x4x256xf32>,
    %c1 = arith.constant 1 : index
    %c0_19 = arith.constant 0 : index
    %c0_20 = arith.constant 0 : index
    %33 = vector.load %arg2[%c1, %c0_19, %c0_20] : memref<2x4x256xf32, #tpu.memory_space<vmem>>, vector<1x4x256xf32>
    %34 = vector.shape_cast %33 : vector<1x4x256xf32> to vector<4x256xf32>
    %c1_21 = arith.constant 1 : index
    %c0_22 = arith.constant 0 : index
    %c0_23 = arith.constant 0 : index
    %35 = vector.load %arg3[%c1_21, %c0_22, %c0_23] : memref<2x4x256xf32, #tpu.memory_space<vmem>>, vector<1x4x256xf32>
    %36 = vector.shape_cast %35 : vector<1x4x256xf32> to vector<4x256xf32>
    %37 = arith.negf %36 : vector<4x256xf32>
    %38 = math.exp %37 : vector<4x256xf32>
    %cst_24 = arith.constant 1.000000e+00 : f32
    %39 = vector.broadcast %cst_24 : f32 to vector<4x256xf32>
    %40 = arith.addf %39, %38 : vector<4x256xf32>
    %41 = arith.divf %39, %40 : vector<4x256xf32>
    %42 = arith.mulf %34, %41 : vector<4x256xf32>
    %cst_25 = arith.constant dense<0.000000e+00> : vector<4x256xf32>
    %43 = tpu.matmul %0, %34, %cst_25 {dimension_numbers = #tpu.dot_dimension_numbers<[1], [0], [0], [1], [0, 0, 1, 1], [], []>} : vector<4x4xf32>, vector<4x256xf32>, vector<4x256xf32> -> vector<4x256xf32>
    %cst_26 = arith.constant dense<0.000000e+00> : vector<4x256xf32>
    %44 = tpu.matmul %1, %42, %cst_26 {dimension_numbers = #tpu.dot_dimension_numbers<[1], [0], [0], [1], [0, 0, 1, 1], [], []>} : vector<4x4xf32>, vector<4x256xf32>, vector<4x256xf32> -> vector<4x256xf32>
    %45 = arith.addf %43, %44 : vector<4x256xf32>
    %46 = vector.broadcast %2 : vector<4x1xf32> to vector<4x256xf32>
    %47 = arith.addf %45, %46 : vector<4x256xf32>
    %cst_27 = arith.constant 0.000000e+00 : f32
    %48 = vector.broadcast %cst_27 : f32 to vector<4x256xf32>
    %49 = arith.maximumf %47, %48 : vector<4x256xf32>
    %50 = math.absf %47 : vector<4x256xf32>
    %cst_28 = arith.constant 0.000000e+00 : f32
    %51 = vector.broadcast %cst_28 : f32 to vector<4x256xf32>
    %52 = arith.subf %51, %50 : vector<4x256xf32>
    %53 = math.exp %52 : vector<4x256xf32>
    %cst_29 = arith.constant 1.000000e+00 : f32
    %54 = vector.broadcast %cst_29 : f32 to vector<4x256xf32>
    %55 = arith.addf %54, %53 : vector<4x256xf32>
    %56 = math.log %55 : vector<4x256xf32>
    %57 = arith.addf %49, %56 : vector<4x256xf32>
    %58 = math.tanh %57 : vector<4x256xf32>
    %59 = arith.mulf %47, %58 : vector<4x256xf32>
    %c1_30 = arith.constant 1 : index
    %c0_31 = arith.constant 0 : index
    %c0_32 = arith.constant 0 : index
    %60 = vector.load %arg7[%c1_30, %c0_31, %c0_32] : memref<2x4x256xf32, #tpu.memory_space<vmem>>, vector<1x4x256xf32>
    %61 = vector.shape_cast %60 : vector<1x4x256xf32> to vector<4x256xf32>
    %62 = vector.shape_cast %59 : vector<4x256xf32> to vector<1x4x256xf32>
    tpu.vector_store %arg7[%c1_30, %c0_31, %c0_32], %62 {strides = array<i32>} : memref<2x4x256xf32, #tpu.memory_space<vmem>>, vector<1x4x256xf32>,
    return
  }
  func.func @transform_0(%arg0: i32, %arg1: i32) -> (i32, i32, i32) {
    %c0_i32 = arith.constant 0 : i32
    %c0_i32_0 = arith.constant 0 : i32
    return %arg0, %c0_i32, %arg1 : i32, i32, i32
  }
  func.func @transform_1(%arg0: i32, %arg1: i32) -> (i32, i32, i32) {
    %c0_i32 = arith.constant 0 : i32
    %c0_i32_0 = arith.constant 0 : i32
    return %arg0, %c0_i32, %arg1 : i32, i32, i32
  }
  func.func @transform_2(%arg0: i32, %arg1: i32) -> (i32, i32) {
    %c0_i32 = arith.constant 0 : i32
    %c0_i32_0 = arith.constant 0 : i32
    %c0_i32_1 = arith.constant 0 : i32
    return %c0_i32, %c0_i32_0 : i32, i32
  }
  func.func @transform_3(%arg0: i32, %arg1: i32) -> (i32, i32) {
    %c0_i32 = arith.constant 0 : i32
    %c0_i32_0 = arith.constant 0 : i32
    %c0_i32_1 = arith.constant 0 : i32
    return %c0_i32, %c0_i32_0 : i32, i32
  }
  func.func @transform_4(%arg0: i32, %arg1: i32) -> (i32, i32) {
    %c0_i32 = arith.constant 0 : i32
    %c0_i32_0 = arith.constant 0 : i32
    %c0_i32_1 = arith.constant 0 : i32
    return %c0_i32, %c0_i32_0 : i32, i32
  }
  func.func @transform_5(%arg0: i32, %arg1: i32) -> (i32, i32, i32) {
    %c0_i32 = arith.constant 0 : i32
    %c0_i32_0 = arith.constant 0 : i32
    return %arg0, %c0_i32, %arg1 : i32, i32, i32
  }
}

</mosaic_0001>

<llo_original>
// kernel: tpu_custom_call.1
$region0: #{tpu_custom_call.1}
  #allocation0 [shape = 'u32[]', space=smem, size = 0x4, offset = 0x4, fixed_abs, tag = 'smem constant byte address 0x4 - core index']
  #allocation1 [shape = 'u32[72,128]{1,0:T(1,128)}', space=vmem, size = 0x9000, scoped, tag = 'internal scratch']
  %s0 = inlined_call_operand.hbm [shape: f32[2,4,256], index: 0, kind: input, shape index: {}]
  %s1 = inlined_call_operand.hbm [shape: f32[2,4,256], index: 1, kind: input, shape index: {}]
  %s2 = inlined_call_operand.vmem [shape: f32[4,4], index: 2, kind: input, shape index: {}]
  %s3 = inlined_call_operand.hbm [shape: f32[4,4], index: 3, kind: input, shape index: {}]
  %s4 = inlined_call_operand.vmem [shape: f32[4,1], index: 4, kind: input, shape index: {}]
  %s5 = inlined_call_operand.hbm [shape: f32[2,4,256], index: 5, kind: output, shape index: {}]
  %s6 = sld [smem:[#allocation0]]
  $region42: #{tpu_custom_call.1} parent=0
    _
  %s8 = ssub.s32 1, %s6
  %s9 = scalar_select 0, %s8, %s6
  $region1: #{tpu_custom_call.1} parent=0
    #allocation2 [shape = 'u8[8192]{0}', space=vmem, size = 0x2000, scoped, tag = 'input window, operand 0, single buffered']
    #allocation3 [shape = 's32[1]{0}', space=sflag, size = 0x4, scoped, tag = 'scoped memory for tpu_custom_call.1']
    #allocation4 [shape = 's32[1]{0}', space=sflag, size = 0x4, scoped, tag = 'scoped memory for tpu_custom_call.1']
    #allocation5 [shape = 'u8[8192]{0}', space=vmem, size = 0x2000, scoped, tag = 'input window, operand 1, single buffered']
    #allocation6 [shape = 's32[1]{0}', space=sflag, size = 0x4, scoped, tag = 'scoped memory for tpu_custom_call.1']
    #allocation7 [shape = 'u8[2048]{0}', space=vmem, size = 0x800, scoped, tag = 'input window, operand 3, single buffered']
    #allocation8 [shape = 'u8[8192]{0}', space=vmem, size = 0x2000, scoped, tag = 'output window, operand 0, single buffered']
    %10 = vsyncpa [#allocation3], 0
    %11 = vsyncpa [#allocation6], 0
    %12 = vsyncpa [#allocation4], 0
    // Predicated region
    $region2: #{tpu_custom_call.1} parent=1 // pred_check
      _
    $region3: #{tpu_custom_call.1} parent=1 // pred_check_branch
      %14 = sbr.rel (0) target = $region5
    $region4: #{tpu_custom_call.1} parent=1 // pred_region
      %16 = vsyncadd [#allocation3], 0
      %s17 = sshll.u32 %s0, 4
      %s18 = int_to_ptr.hbm [resolvable:$true] %s17
      %s19 = sshll.u32 [#allocation2], 4
      %s20 = int_to_ptr.vmem [resolvable:$true] %s19
      %25 = dma.hbm_to_vmem [thread:$0]  %s18, 256, %s20, [#allocation3], 128, 128, 8
    $region5: #{tpu_custom_call.1} parent=1 // pred_fallthru
      _
    // Predicated region
    $region6: #{tpu_custom_call.1} parent=1 // pred_check
      _
    $region7: #{tpu_custom_call.1} parent=1 // pred_check_branch
      %27 = sbr.rel (0) target = $region9
    $region8: #{tpu_custom_call.1} parent=1 // pred_region
      %29 = vsyncadd [#allocation6], 0
      %s30 = sshll.u32 %s1, 4
      %s31 = int_to_ptr.hbm [resolvable:$true] %s30
      %s32 = sshll.u32 [#allocation5], 4
      %s33 = int_to_ptr.vmem [resolvable:$true] %s32
      %38 = dma.hbm_to_vmem [thread:$0]  %s31, 256, %s33, [#allocation6], 128, 128, 8
    $region9: #{tpu_custom_call.1} parent=1 // pred_fallthru
      _
    // Predicated region
    $region10: #{tpu_custom_call.1} parent=1 // pred_check
      _
    $region11: #{tpu_custom_call.1} parent=1 // pred_check_branch
      %40 = sbr.rel (0) target = $region13
    $region12: #{tpu_custom_call.1} parent=1 // pred_region
      _
    $region13: #{tpu_custom_call.1} parent=1 // pred_fallthru
      _
    // Predicated region
    $region14: #{tpu_custom_call.1} parent=1 // pred_check
      _
    $region15: #{tpu_custom_call.1} parent=1 // pred_check_branch
      %42 = sbr.rel (0) target = $region17
    $region16: #{tpu_custom_call.1} parent=1 // pred_region
      %44 = vsyncadd [#allocation6], 0
      %s46 = sshll.u32 %s3, 4
      %s47 = int_to_ptr.hbm [resolvable:$true] %s46
      %s48 = sshll.u32 [#allocation7], 4
      %s49 = int_to_ptr.vmem [resolvable:$true] %s48
      %51 = dma.hbm_to_vmem [thread:$0]  %s47, 64, %s49, [#allocation6]
    $region17: #{tpu_custom_call.1} parent=1 // pred_fallthru
      _
    // Predicated region
    $region18: #{tpu_custom_call.1} parent=1 // pred_check
      _
    $region19: #{tpu_custom_call.1} parent=1 // pred_check_branch
      %53 = sbr.rel (0) target = $region21
    $region20: #{tpu_custom_call.1} parent=1 // pred_region
      _
    $region21: #{tpu_custom_call.1} parent=1 // pred_fallthru
      _
    // Predicated region
    $region22: #{tpu_custom_call.1} parent=1 // pred_check
      _
    $region23: #{tpu_custom_call.1} parent=1 // pred_check_branch
      %55 = sbr.rel (0) target = $region25
    $region24: #{tpu_custom_call.1} parent=1 // pred_region
      %57 = dma.done [#allocation3], 256
    $region25: #{tpu_custom_call.1} parent=1 // pred_fallthru
      _
    // Predicated region
    $region26: #{tpu_custom_call.1} parent=1 // pred_check
      _
    $region27: #{tpu_custom_call.1} parent=1 // pred_check_branch
      %59 = sbr.rel (0) target = $region29
    $region28: #{tpu_custom_call.1} parent=1 // pred_region
      %61 = dma.done [#allocation6], 256
    $region29: #{tpu_custom_call.1} parent=1 // pred_fallthru
      _
    // Predicated region
    $region30: #{tpu_custom_call.1} parent=1 // pred_check
      _
    $region31: #{tpu_custom_call.1} parent=1 // pred_check_branch
      %63 = sbr.rel (0) target = $region33
    $region32: #{tpu_custom_call.1} parent=1 // pred_region
      %65 = dma.done [#allocation6], 64
    $region33: #{tpu_custom_call.1} parent=1 // pred_fallthru
      _
    %v66 = vld [vmem:[%s2] sm:$0xf]
    %v67 = vld [vmem:[#allocation7] sm:$0xf]
    %v68 = vld [vmem:[%s4] sm:$0xf]
    %v69 = vld [vmem:[#allocation2] sm:$0xff]
    %v70 = vld [vmem:[#allocation5] sm:$0xff]
    %v71 = vxor.u32 %v70, 2147483648
    %v72 = vmul.f32 %v71, 1.442695
    %v73 = vpow.pop %v72
    %v74 = vadd.f32 %v73, 1.0
    %v75 = vrcp.pop %v74
    %v76 = vmul.f32 %v74, %v75
    %v77 = vsub.f32 1.0, %v76
    %v78 = vmul.f32 %v75, %v77
    %v79 = vadd.f32 %v75, %v78
    %vm80 = vweird.f32 %v74
    %vm81 = vweird.f32 %v75
    %vm82 = vmor %vm80, %vm81
    %v83 = vsel %vm82, %v75, %v79
    %v84 = vand.u32 2147483647, %v74
    %vm85 = vcmp.eq.f32.partialorder %v84, 8.507059e+37
    %v86 = vand.u32 %v74, 2147483648
    %v87 = vor.u32 1.1754944e-38, %v86
    %v88 = vsel %vm85, %v87, %v83
    %v89 = vmul.f32 1.0, %v88
    %v90 = vmul.f32 %v69, %v89
    %92 = vst [vmem:[#allocation1] ss:$2 sm:$0xff] %v90
    %v93 = vld.sshfl [vmem:[#allocation1] sm:$0xff pattern:$0x75316420]
    %v94 = vld.sshfl [vmem:[#allocation1 + $0x8] sm:$0xff pattern:$0x75316420]
    %vm95 = vcmask 31744
    %v97 = vsel %vm95, %v67, 0
    %vm99 = vcmask 1043456
    %v100 = vsel %vm99, %v93, 0
    %v102 = vsel %vm99, %v94, 0
    %104 = vmatpush.msra.mxu0 0.0
    %105 = vmatpush.msra.mxu0 0.0
    %106 = vmatpush.msra.mxu0 0.0
    %107 = vmatpush.msra.mxu0 0.0
    %108 = vmatpush.msra.mxu0 0.0
    %109 = vmatpush.msra.mxu0 0.0
    %110 = vmatpush.msra.mxu0 0.0
    %111 = vmatpush.msra.mxu0 0.0
    %112 = vmatpush.msra.mxu0 0.0
    %113 = vmatpush.msra.mxu0 0.0
    %114 = vmatpush.msra.mxu0 0.0
    %115 = vmatpush.msra.mxu0 0.0
    %116 = vmatpush.msra.mxu0 0.0
    %117 = vmatpush.msra.mxu0 0.0
    %118 = vmatpush.msra.mxu0 0.0
    %119 = vmatpush.msra.mxu0 %v100
    %120 = vmatmul.f32.gmra.mxu0 %v97
    %v121 = vpop.f32.mrf.mxu0
    %v122 = vadd.f32 0.0, %v121
    %123 = vdwg.mxu0
    %124 = vmatpush.msra.mxu0 0.0
    %125 = vmatpush.msra.mxu0 0.0
    %126 = vmatpush.msra.mxu0 0.0
    %127 = vmatpush.msra.mxu0 0.0
    %128 = vmatpush.msra.mxu0 0.0
    %129 = vmatpush.msra.mxu0 0.0
    %130 = vmatpush.msra.mxu0 0.0
    %131 = vmatpush.msra.mxu0 0.0
    %132 = vmatpush.msra.mxu0 0.0
    %133 = vmatpush.msra.mxu0 0.0
    %134 = vmatpush.msra.mxu0 0.0
    %135 = vmatpush.msra.mxu0 0.0
    %136 = vmatpush.msra.mxu0 0.0
    %137 = vmatpush.msra.mxu0 0.0
    %138 = vmatpush.msra.mxu0 0.0
    %139 = vmatpush.msra.mxu0 %v102
    %140 = vmatmul.f32.gmra.mxu0 %v97
    %v141 = vpop.f32.mrf.mxu0
    %v142 = vadd.f32 0.0, %v141
    %143 = vdwg.mxu0
    %145 = vst [vmem:[#allocation1] ss:$2 sm:$0xff] %v69
    %v146 = vld.sshfl [vmem:[#allocation1] sm:$0xff pattern:$0x75316420]
    %v147 = vld.sshfl [vmem:[#allocation1 + $0x8] sm:$0xff pattern:$0x75316420]
    %v149 = vsel %vm95, %v66, 0
    %v151 = vsel %vm99, %v146, 0
    %v153 = vsel %vm99, %v147, 0
    %155 = vmatpush.msra.mxu0 0.0
    %156 = vmatpush.msra.mxu0 0.0
    %157 = vmatpush.msra.mxu0 0.0
    %158 = vmatpush.msra.mxu0 0.0
    %159 = vmatpush.msra.mxu0 0.0
    %160 = vmatpush.msra.mxu0 0.0
    %161 = vmatpush.msra.mxu0 0.0
    %162 = vmatpush.msra.mxu0 0.0
    %163 = vmatpush.msra.mxu0 0.0
    %164 = vmatpush.msra.mxu0 0.0
    %165 = vmatpush.msra.mxu0 0.0
    %166 = vmatpush.msra.mxu0 0.0
    %167 = vmatpush.msra.mxu0 0.0
    %168 = vmatpush.msra.mxu0 0.0
    %169 = vmatpush.msra.mxu0 0.0
    %170 = vmatpush.msra.mxu0 %v151
    %171 = vmatmul.f32.gmra.mxu0 %v149
    %v172 = vpop.f32.mrf.mxu0
    %v173 = vadd.f32 %v122, %v172
    %174 = vdwg.mxu0
    %175 = vmatpush.msra.mxu0 0.0
    %176 = vmatpush.msra.mxu0 0.0
    %177 = vmatpush.msra.mxu0 0.0
    %178 = vmatpush.msra.mxu0 0.0
    %179 = vmatpush.msra.mxu0 0.0
    %180 = vmatpush.msra.mxu0 0.0
    %181 = vmatpush.msra.mxu0 0.0
    %182 = vmatpush.msra.mxu0 0.0
    %183 = vmatpush.msra.mxu0 0.0
    %184 = vmatpush.msra.mxu0 0.0
    %185 = vmatpush.msra.mxu0 0.0
    %186 = vmatpush.msra.mxu0 0.0
    %187 = vmatpush.msra.mxu0 0.0
    %188 = vmatpush.msra.mxu0 0.0
    %189 = vmatpush.msra.mxu0 0.0
    %190 = vmatpush.msra.mxu0 %v153
    %191 = vmatmul.f32.gmra.mxu0 %v149
    %v192 = vpop.f32.mrf.mxu0
    %v193 = vadd.f32 %v142, %v192
    %194 = vdwg.mxu0
    %196 = vset.pattern.permute.xlu0 0
    %197 = vperm.xlu0 %196, %v68
    %v198 = vpop.permute.xlu0 %197
    %v200 = vadd.f32 %v173, %v198
    %v201 = vadd.f32 %v193, %v198
    %v202 = vmax.f32 %v200, 0.0
    %v203 = vmax.f32 %v201, 0.0
    %v204 = vand.u32 2147483647, %v200
    %v205 = vand.u32 2147483647, %v201
    %v206 = vsub.f32 0.0, %v204
    %v207 = vsub.f32 0.0, %v205
    %v208 = vmul.f32 %v206, 1.442695
    %v209 = vpow.pop %v208
    %v210 = vmul.f32 %v207, 1.442695
    %v211 = vpow.pop %v210
    %v212 = vadd.f32 %v209, 1.0
    %v213 = vadd.f32 %v211, 1.0
    %v214 = vlog2.pop %v212
    %v215 = vmul.f32 %v214, 0.6931472
    %v216 = vlog2.pop %v213
    %v217 = vmul.f32 %v216, 0.6931472
    %v218 = vadd.f32 %v202, %v215
    %v219 = vadd.f32 %v203, %v217
    %v220 = vtanh.pop %v218
    %v221 = vtanh.pop %v219
    %v222 = vmul.f32 %v200, %v220
    %v223 = vmul.f32 %v201, %v221
    %v226 = vrot.slane %v223, 4
    %v227 = vsel %vm99, %v222, %v226
    %229 = vst [vmem:[#allocation8] sm:$0xff] %v227
    %s230 = scalar_lea.vmem [#allocation2], 8
    %v231 = vld [vmem:[%s230] sm:$0xff]
    %s232 = scalar_lea.vmem [#allocation5], 8
    %v233 = vld [vmem:[%s232] sm:$0xff]
    %v234 = vxor.u32 %v233, 2147483648
    %v235 = vmul.f32 %v234, 1.442695
    %v236 = vpow.pop %v235
    %v237 = vadd.f32 %v236, 1.0
    %v238 = vrcp.pop %v237
    %v239 = vmul.f32 %v237, %v238
    %v240 = vsub.f32 1.0, %v239
    %v241 = vmul.f32 %v238, %v240
    %v242 = vadd.f32 %v238, %v241
    %vm243 = vweird.f32 %v237
    %vm244 = vweird.f32 %v238
    %vm245 = vmor %vm243, %vm244
    %v246 = vsel %vm245, %v238, %v242
    %v247 = vand.u32 2147483647, %v237
    %vm248 = vcmp.eq.f32.partialorder %v247, 8.507059e+37
    %v249 = vand.u32 %v237, 2147483648
    %v250 = vor.u32 1.1754944e-38, %v249
    %v251 = vsel %vm248, %v250, %v246
    %v252 = vmul.f32 1.0, %v251
    %v253 = vmul.f32 %v231, %v252
    %255 = vst [vmem:[#allocation1] ss:$2 sm:$0xff] %v253
    %v256 = vld.sshfl [vmem:[#allocation1] sm:$0xff pattern:$0x75316420]
    %v257 = vld.sshfl [vmem:[#allocation1 + $0x8] sm:$0xff pattern:$0x75316420]
    %v258 = vsel %vm99, %v256, 0
    %v260 = vsel %vm99, %v257, 0
    %262 = vmatpush.msra.mxu0 0.0
    %263 = vmatpush.msra.mxu0 0.0
    %264 = vmatpush.msra.mxu0 0.0
    %265 = vmatpush.msra.mxu0 0.0
    %266 = vmatpush.msra.mxu0 0.0
    %267 = vmatpush.msra.mxu0 0.0
    %268 = vmatpush.msra.mxu0 0.0
    %269 = vmatpush.msra.mxu0 0.0
    %270 = vmatpush.msra.mxu0 0.0
    %271 = vmatpush.msra.mxu0 0.0
    %272 = vmatpush.msra.mxu0 0.0
    %273 = vmatpush.msra.mxu0 0.0
    %274 = vmatpush.msra.mxu0 0.0
    %275 = vmatpush.msra.mxu0 0.0
    %276 = vmatpush.msra.mxu0 0.0
    %277 = vmatpush.msra.mxu0 %v258
    %278 = vmatmul.f32.gmra.mxu0 %v97
    %v279 = vpop.f32.mrf.mxu0
    %v280 = vadd.f32 0.0, %v279
    %281 = vdwg.mxu0
    %282 = vmatpush.msra.mxu0 0.0
    %283 = vmatpush.msra.mxu0 0.0
    %284 = vmatpush.msra.mxu0 0.0
    %285 = vmatpush.msra.mxu0 0.0
    %286 = vmatpush.msra.mxu0 0.0
    %287 = vmatpush.msra.mxu0 0.0
    %288 = vmatpush.msra.mxu0 0.0
    %289 = vmatpush.msra.mxu0 0.0
    %290 = vmatpush.msra.mxu0 0.0
    %291 = vmatpush.msra.mxu0 0.0
    %292 = vmatpush.msra.mxu0 0.0
    %293 = vmatpush.msra.mxu0 0.0
    %294 = vmatpush.msra.mxu0 0.0
    %295 = vmatpush.msra.mxu0 0.0
    %296 = vmatpush.msra.mxu0 0.0
    %297 = vmatpush.msra.mxu0 %v260
    %298 = vmatmul.f32.gmra.mxu0 %v97
    %v299 = vpop.f32.mrf.mxu0
    %v300 = vadd.f32 0.0, %v299
    %301 = vdwg.mxu0
    %303 = vst [vmem:[#allocation1] ss:$2 sm:$0xff] %v231
    %v304 = vld.sshfl [vmem:[#allocation1] sm:$0xff pattern:$0x75316420]
    %v305 = vld.sshfl [vmem:[#allocation1 + $0x8] sm:$0xff pattern:$0x75316420]
    %v306 = vsel %vm99, %v304, 0
    %v308 = vsel %vm99, %v305, 0
    %310 = vmatpush.msra.mxu0 0.0
    %311 = vmatpush.msra.mxu0 0.0
    %312 = vmatpush.msra.mxu0 0.0
    %313 = vmatpush.msra.mxu0 0.0
    %314 = vmatpush.msra.mxu0 0.0
    %315 = vmatpush.msra.mxu0 0.0
    %316 = vmatpush.msra.mxu0 0.0
    %317 = vmatpush.msra.mxu0 0.0
    %318 = vmatpush.msra.mxu0 0.0
    %319 = vmatpush.msra.mxu0 0.0
    %320 = vmatpush.msra.mxu0 0.0
    %321 = vmatpush.msra.mxu0 0.0
    %322 = vmatpush.msra.mxu0 0.0
    %323 = vmatpush.msra.mxu0 0.0
    %324 = vmatpush.msra.mxu0 0.0
    %325 = vmatpush.msra.mxu0 %v306
    %326 = vmatmul.f32.gmra.mxu0 %v149
    %v327 = vpop.f32.mrf.mxu0
    %v328 = vadd.f32 %v280, %v327
    %329 = vdwg.mxu0
    %330 = vmatpush.msra.mxu0 0.0
    %331 = vmatpush.msra.mxu0 0.0
    %332 = vmatpush.msra.mxu0 0.0
    %333 = vmatpush.msra.mxu0 0.0
    %334 = vmatpush.msra.mxu0 0.0
    %335 = vmatpush.msra.mxu0 0.0
    %336 = vmatpush.msra.mxu0 0.0
    %337 = vmatpush.msra.mxu0 0.0
    %338 = vmatpush.msra.mxu0 0.0
    %339 = vmatpush.msra.mxu0 0.0
    %340 = vmatpush.msra.mxu0 0.0
    %341 = vmatpush.msra.mxu0 0.0
    %342 = vmatpush.msra.mxu0 0.0
    %343 = vmatpush.msra.mxu0 0.0
    %344 = vmatpush.msra.mxu0 0.0
    %345 = vmatpush.msra.mxu0 %v308
    %346 = vmatmul.f32.gmra.mxu0 %v149
    %v347 = vpop.f32.mrf.mxu0
    %v348 = vadd.f32 %v300, %v347
    %349 = vdwg.mxu0
    %v350 = vadd.f32 %v328, %v198
    %v351 = vadd.f32 %v348, %v198
    %v352 = vmax.f32 %v350, 0.0
    %v353 = vmax.f32 %v351, 0.0
    %v354 = vand.u32 2147483647, %v350
    %v355 = vand.u32 2147483647, %v351
    %v356 = vsub.f32 0.0, %v354
    %v357 = vsub.f32 0.0, %v355
    %v358 = vmul.f32 %v356, 1.442695
    %v359 = vpow.pop %v358
    %v360 = vmul.f32 %v357, 1.442695
    %v361 = vpow.pop %v360
    %v362 = vadd.f32 %v359, 1.0
    %v363 = vadd.f32 %v361, 1.0
    %v364 = vlog2.pop %v362
    %v365 = vmul.f32 %v364, 0.6931472
    %v366 = vlog2.pop %v363
    %v367 = vmul.f32 %v366, 0.6931472
    %v368 = vadd.f32 %v352, %v365
    %v369 = vadd.f32 %v353, %v367
    %v370 = vtanh.pop %v368
    %v371 = vtanh.pop %v369
    %v372 = vmul.f32 %v350, %v370
    %v373 = vmul.f32 %v351, %v371
    %v376 = vrot.slane %v373, 4
    %v377 = vsel %vm99, %v372, %v376
    %s379 = scalar_lea.vmem [#allocation8], 8
    %380 = vst [vmem:[%s379] sm:$0xff] %v377
    // Predicated region
    $region34: #{tpu_custom_call.1} parent=1 // pred_check
      _
    $region35: #{tpu_custom_call.1} parent=1 // pred_check_branch
      %382 = sbr.rel (0) target = $region37
    $region36: #{tpu_custom_call.1} parent=1 // pred_region
      %384 = vsyncadd [#allocation4], 0
      %s385 = sshll.u32 [#allocation8], 4
      %s386 = int_to_ptr.vmem [resolvable:$true] %s385
      %s387 = sshll.u32 %s5, 4
      %s388 = int_to_ptr.hbm [resolvable:$true] %s387
      %393 = dma.vmem_to_hbm [thread:$0]  %s386, 256, %s388, [#allocation4], 128, 128, 8
    $region37: #{tpu_custom_call.1} parent=1 // pred_fallthru
      _
    // Predicated region
    $region38: #{tpu_custom_call.1} parent=1 // pred_check
      _
    $region39: #{tpu_custom_call.1} parent=1 // pred_check_branch
      %395 = sbr.rel (0) target = $region41
    $region40: #{tpu_custom_call.1} parent=1 // pred_region
      %397 = dma.done [#allocation4], 256
    $region41: #{tpu_custom_call.1} parent=1 // pred_fallthru
      _
    %398 = vsyncpa [#allocation3], 1
    %399 = vsyncpa [#allocation6], 1
    %400 = vsyncpa [#allocation4], 1

</llo_original>
